<compile_context>
chip_gen: v6e
topology: v6e:2x2x1
jax: 0.10.0
libtpu: 0.0.40
codegen_flags: <defaults>
</compile_context>

<pallas_src>
import functools

import jax
import jax.numpy as jnp
from jax.experimental import pallas as pl
from jax.experimental.pallas import tpu as pltpu


def _round_up(x, m):
    return (x + m - 1) // m * m


# ---------------------------------------------------------------------------
# Pallas kernels
# ---------------------------------------------------------------------------
def _fused_conv_bn_relu_kernel(p_ref, w_ref, g_ref, b_ref, o_ref, *, inv_count):
    # Whole problem in one block: matmul (bf16 -> f32 acc), batch stats over rows,
    # normalize, affine, ReLU.  Zero-padded rows contribute 0 to sum/sumsq and we
    # divide by the real row count, so stats are exact.
    y = jnp.dot(p_ref[...], w_ref[...], preferred_element_type=jnp.float32)
    mean = jnp.sum(y, axis=0, keepdims=True) * inv_count
    var = jnp.sum(y * y, axis=0, keepdims=True) * inv_count - mean * mean
    scale = jax.lax.rsqrt(var + 1e-5) * g_ref[...]
    shift = b_ref[...] - mean * scale
    o_ref[...] = jnp.maximum(y * scale + shift, 0.0)


def _matmul_stats_kernel(p_ref, w_ref, y_ref, stats_ref):
    # Tiled over M.  Writes the conv output tile and accumulates per-channel
    # sum / sum-of-squares into a VMEM-resident (2, N) accumulator output
    # (same block for every grid step -> the M axis must be "arbitrary").
    y = jnp.dot(p_ref[...], w_ref[...], preferred_element_type=jnp.float32)
    y_ref[...] = y

    @pl.when(pl.program_id(0) == 0)
    def _():
        stats_ref[...] = jnp.zeros_like(stats_ref)

    col_sum = jnp.sum(y, axis=0, keepdims=True)
    col_sqsum = jnp.sum(y * y, axis=0, keepdims=True)
    stats_ref[...] += jnp.concatenate([col_sum, col_sqsum], axis=0)


def _bn_relu_apply_kernel(y_ref, stats_ref, g_ref, b_ref, o_ref, *, inv_count):
    # Normalize + affine + ReLU one M-tile at a time ("parallel" grid axis).
    stats = stats_ref[...]
    mean = stats[0:1, :] * inv_count
    var = stats[1:2, :] * inv_count - mean * mean
    scale = jax.lax.rsqrt(var + 1e-5) * g_ref[...]
    shift = b_ref[...] - mean * scale
    o_ref[...] = jnp.maximum(y_ref[...] * scale + shift, 0.0)


# ---------------------------------------------------------------------------
# pallas_call wrappers
# ---------------------------------------------------------------------------
_VMEM_LIMIT = 32 * 1024 * 1024  # conservative for v7x (64 MiB physical VMEM)


def conv_bn_relu_fused(patches, wmat, gamma, beta, m_real):
    M_pad, K_pad = patches.shape
    _, N_pad = wmat.shape
    return pl.pallas_call(
        functools.partial(_fused_conv_bn_relu_kernel, inv_count=1.0 / float(m_real)),
        out_shape=jax.ShapeDtypeStruct((M_pad, N_pad), jnp.float32),
        grid=(1,),
        in_specs=[
            pl.BlockSpec((M_pad, K_pad), lambda i: (0, 0)),
            pl.BlockSpec((K_pad, N_pad), lambda i: (0, 0)),
            pl.BlockSpec((1, N_pad), lambda i: (0, 0)),
            pl.BlockSpec((1, N_pad), lambda i: (0, 0)),
        ],
        out_specs=pl.BlockSpec((M_pad, N_pad), lambda i: (0, 0)),
        compiler_params=pltpu.CompilerParams(
            dimension_semantics=("arbitrary",),
            vmem_limit_bytes=_VMEM_LIMIT,
        ),
    )(patches, wmat, gamma, beta)


def conv_bn_relu_tiled(patches, wmat, gamma, beta, m_real, tm):
    M_pad, K_pad = patches.shape
    _, N_pad = wmat.shape
    n_tiles = M_pad // tm
    inv_count = 1.0 / float(m_real)

    # Pass 1: tiled matmul with fused per-channel sum / sumsq accumulation.
    # NOTE: the stats accumulator output is revisited across the M axis, so this
    # axis must be "arbitrary" (cannot be megacore-sharded).
    y, stats = pl.pallas_call(
        _matmul_stats_kernel,
        out_shape=(
            jax.ShapeDtypeStruct((M_pad, N_pad), jnp.float32),
            jax.ShapeDtypeStruct((2, N_pad), jnp.float32),
        ),
        grid=(n_tiles,),
        in_specs=[
            pl.BlockSpec((tm, K_pad), lambda i: (i, 0)),
            pl.BlockSpec((K_pad, N_pad), lambda i: (0, 0)),
        ],
        out_specs=(
            pl.BlockSpec((tm, N_pad), lambda i: (i, 0)),
            pl.BlockSpec((2, N_pad), lambda i: (0, 0)),
        ),
        compiler_params=pltpu.CompilerParams(
            dimension_semantics=("arbitrary",),
            vmem_limit_bytes=_VMEM_LIMIT,
        ),
    )(patches, wmat)

    # Pass 2: normalize + ReLU each M tile; fully parallel over the grid axis
    # (uses both TensorCores on v7x).
    out = pl.pallas_call(
        functools.partial(_bn_relu_apply_kernel, inv_count=inv_count),
        out_shape=jax.ShapeDtypeStruct((M_pad, N_pad), jnp.float32),
        grid=(n_tiles,),
        in_specs=[
            pl.BlockSpec((tm, N_pad), lambda i: (i, 0)),
            pl.BlockSpec((2, N_pad), lambda i: (0, 0)),
            pl.BlockSpec((1, N_pad), lambda i: (0, 0)),
            pl.BlockSpec((1, N_pad), lambda i: (0, 0)),
        ],
        out_specs=pl.BlockSpec((tm, N_pad), lambda i: (i, 0)),
        compiler_params=pltpu.CompilerParams(
            dimension_semantics=("parallel",),
            vmem_limit_bytes=_VMEM_LIMIT,
        ),
    )(y, stats, gamma, beta)
    return out


# ---------------------------------------------------------------------------
# Glue: im2col for Conv3d (pure strided-slice work; all matmuls run in Pallas)
# ---------------------------------------------------------------------------
def im2col_3d(x, ksize, stride, padding):
    # TODO(synk): for large volumes, stream the (kd,kh,kw) taps from HBM with manual
    # DMA inside the kernel instead of materializing a kd*kh*kw-expanded patch tensor.
    kd, kh, kw = ksize
    sd, sh, sw = stride
    pd, ph, pw = padding
    x = jnp.pad(x, ((0, 0), (0, 0), (pd, pd), (ph, ph), (pw, pw)))
    B, C, D, H, W = x.shape
    Do = (D - kd) // sd + 1
    Ho = (H - kh) // sh + 1
    Wo = (W - kw) // sw + 1
    cols = []
    for dz in range(kd):
        for dy in range(kh):
            for dx in range(kw):
                cols.append(
                    x[:, :, dz: dz + sd * Do: sd,
                          dy: dy + sh * Ho: sh,
                          dx: dx + sw * Wo: sw]
                )  # (B, C, Do, Ho, Wo)
    p = jnp.stack(cols, axis=2)                      # (B, C, kd*kh*kw, Do, Ho, Wo)
    p = p.reshape(B, C * kd * kh * kw, Do, Ho, Wo)   # matches torch weight flatten (Cin,kd,kh,kw)
    p = p.transpose(0, 2, 3, 4, 1).reshape(B * Do * Ho * Wo, C * kd * kh * kw)
    return p, (B, Do, Ho, Wo)


def encoder_block_forward(x, params, stride, padding, *, max_fused_rows=1024, tm=512):
    """EncoderBlock.forward: Conv3d -> BatchNorm3d(train-mode batch stats) -> ReLU.

    x: (B, Cin, D, H, W) NCDHW float32.  Returns (B, Cout, Do, Ho, Wo) float32.
    The conv bias (params["b"]) is intentionally not added: BN's batch-mean
    subtraction cancels any per-channel constant exactly.
    """
    w = params["w"]                                   # (Cout, Cin, kd, kh, kw)
    gamma, beta = params["gamma"], params["beta"]
    Cout = w.shape[0]
    ksize = w.shape[2:]

    patches, (B, Do, Ho, Wo) = im2col_3d(x, ksize, stride, padding)   # (M, K), channels-last
    M, K = patches.shape

    # Pad K/N to 128 lanes (unmasked MXU/loads/stores), M to sublane multiples.
    K_pad = _round_up(K, 128)
    N_pad = _round_up(Cout, 128)

    wmat = w.reshape(Cout, K).T                        # (K, Cout), matches torch flatten order
    wmat = jnp.pad(wmat, ((0, K_pad - K), (0, N_pad - Cout))).astype(jnp.bfloat16)
    g = jnp.pad(gamma, (0, N_pad - Cout)).reshape(1, N_pad).astype(jnp.float32)
    bt = jnp.pad(beta, (0, N_pad - Cout)).reshape(1, N_pad).astype(jnp.float32)

    M8 = _round_up(M, 8)
    if M8 <= max_fused_rows:
        # Small problem: fully fused single-block kernel (conv output never touches HBM).
        p = jnp.pad(patches, ((0, M8 - M), (0, K_pad - K))).astype(jnp.bfloat16)
        out = conv_bn_relu_fused(p, wmat, g, bt, M)
    else:
        # Large problem: tiled, pipelined path (K is assumed to fit one block for this module).
        tm_eff = min(tm, M8)
        M_pad = _round_up(M, tm_eff)
        p = jnp.pad(patches, ((0, M_pad - M), (0, K_pad - K))).astype(jnp.bfloat16)
        out = conv_bn_relu_tiled(p, wmat, g, bt, M, tm_eff)

    out = out[:M, :Cout].reshape(B, Do, Ho, Wo, Cout)
    return out.transpose(0, 4, 1, 2, 3)                # back to NCDHW


# ---------------------------------------------------------------------------
# Pure-JAX reference (includes the conv bias; BN training-mode batch stats)
# ---------------------------------------------------------------------------
def reference_forward(x, w, b, gamma, beta, stride, padding):
    y = jax.lax.conv_general_dilated(
        x, w, window_strides=stride,
        padding=[(p, p) for p in padding],
        dimension_numbers=("NCDHW", "OIDHW", "NCDHW"))
    y = y + b.reshape(1, -1, 1, 1, 1)
    mean = y.mean(axis=(0, 2, 3, 4), keepdims=True)
    var = ((y - mean) ** 2).mean(axis=(0, 2, 3, 4), keepdims=True)   # biased variance
    y = (y - mean) * jax.lax.rsqrt(var + 1e-5)
    y = y * gamma.reshape(1, -1, 1, 1, 1) + beta.reshape(1, -1, 1, 1, 1)
    return jnp.maximum(y, 0.0)


# ---------------------------------------------------------------------------
if __name__ == "__main__":
    B, Cin, D = 2, 4, 8
    Cout = 8
    ksize, stride, padding = (3, 3, 3), (2, 2, 2), (1, 1, 1)

    key = jax.random.PRNGKey(0)
    kx, kw_, kb_, kg_, kbe_ = jax.random.split(key, 5)
    x = jax.random.normal(kx, (B, Cin, D, D, D), dtype=jnp.float32)
    params = dict(
        w=0.1 * jax.random.normal(kw_, (Cout, Cin) + ksize, dtype=jnp.float32),
        b=0.1 * jax.random.normal(kb_, (Cout,), dtype=jnp.float32),
        gamma=1.0 + 0.1 * jax.random.normal(kg_, (Cout,), dtype=jnp.float32),
        beta=0.1 * jax.random.normal(kbe_, (Cout,), dtype=jnp.float32),
    )

    # Fully fused single-block path (the natural choice at these shapes).
    out_fused = encoder_block_forward(x, params, stride, padding)
    # Force the tiled/pipelined path as well so both code paths are exercised.
    out_tiled = encoder_block_forward(x, params, stride, padding, max_fused_rows=0, tm=64)
    ref = reference_forward(x, params["w"], params["b"], params["gamma"],
                            params["beta"], stride, padding)
    jax.block_until_ready((out_fused, out_tiled, ref))

    assert out_fused.shape == (B, Cout, 4, 4, 4)
    assert out_tiled.shape == (B, Cout, 4, 4, 4)
    assert float(jnp.max(jnp.abs(out_fused - ref))) < 1e-1
    assert float(jnp.max(jnp.abs(out_tiled - ref))) < 1e-1
    print("KERNEL_OK")
</pallas_src>

<mosaic_0001>
module attributes {stable_mosaic.version = 11 : i64} {
  func.func @_fused_conv_bn_relu_kernel(%arg0: i32, %arg1: memref<128x128xbf16, #tpu.memory_space<vmem>>, %arg2: memref<128x128xbf16, #tpu.memory_space<vmem>>, %arg3: memref<1x128xf32, #tpu.memory_space<vmem>>, %arg4: memref<1x128xf32, #tpu.memory_space<vmem>>, %arg5: memref<128x128xf32, #tpu.memory_space<vmem>>) attributes {dimension_semantics = [#tpu.dimension_semantics<arbitrary>], iteration_bounds = array<i64: 1>, scalar_prefetch = 0 : i64, scratch_operands = 0 : i64, tpu.core_type = #tpu.core_type<tc>, window_params = [{pipeline_mode = #tpu.pipeline_mode<synchronous>, transform_indices = @transform_0, window_bounds = array<i64: 128, 128>}, {pipeline_mode = #tpu.pipeline_mode<synchronous>, transform_indices = @transform_1, window_bounds = array<i64: 128, 128>}, {pipeline_mode = #tpu.pipeline_mode<synchronous>, transform_indices = @transform_2, window_bounds = array<i64: 1, 128>}, {pipeline_mode = #tpu.pipeline_mode<synchronous>, transform_indices = @transform_3, window_bounds = array<i64: 1, 128>}, {pipeline_mode = #tpu.pipeline_mode<synchronous>, transform_indices = @transform_4, window_bounds = array<i64: 128, 128>}]} {
    %c0 = arith.constant 0 : index
    %c0_0 = arith.constant 0 : index
    %0 = vector.load %arg1[%c0, %c0_0] : memref<128x128xbf16, #tpu.memory_space<vmem>>, vector<128x128xbf16>
    %c0_1 = arith.constant 0 : index
    %c0_2 = arith.constant 0 : index
    %1 = vector.load %arg2[%c0_1, %c0_2] : memref<128x128xbf16, #tpu.memory_space<vmem>>, vector<128x128xbf16>
    %cst = arith.constant dense<0.000000e+00> : vector<128x128xf32>
    %2 = tpu.matmul %0, %1, %cst {dimension_numbers = #tpu.dot_dimension_numbers<[1], [0], [0], [1], [0, 0, 1, 1], [], []>} : vector<128x128xbf16>, vector<128x128xbf16>, vector<128x128xf32> -> vector<128x128xf32>
    %cst_3 = arith.constant dense<0.000000e+00> : vector<128xf32>
    %3 = vector.multi_reduction <add>, %2, %cst_3 [0] : vector<128x128xf32> to vector<128xf32>
    %4 = vector.shape_cast %3 : vector<128xf32> to vector<1x128xf32>
    %cst_4 = arith.constant 7.812500e-03 : f32
    %5 = vector.broadcast %cst_4 : f32 to vector<1x128xf32>
    %6 = arith.mulf %4, %5 : vector<1x128xf32>
    %7 = arith.mulf %2, %2 : vector<128x128xf32>
    %cst_5 = arith.constant dense<0.000000e+00> : vector<128xf32>
    %8 = vector.multi_reduction <add>, %7, %cst_5 [0] : vector<128x128xf32> to vector<128xf32>
    %9 = vector.shape_cast %8 : vector<128xf32> to vector<1x128xf32>
    %cst_6 = arith.constant 7.812500e-03 : f32
    %10 = vector.broadcast %cst_6 : f32 to vector<1x128xf32>
    %11 = arith.mulf %9, %10 : vector<1x128xf32>
    %12 = arith.mulf %6, %6 : vector<1x128xf32>
    %13 = arith.subf %11, %12 : vector<1x128xf32>
    %cst_7 = arith.constant 9.99999974E-6 : f32
    %14 = vector.broadcast %cst_7 : f32 to vector<1x128xf32>
    %15 = arith.addf %13, %14 : vector<1x128xf32>
    %16 = math.rsqrt %15 : vector<1x128xf32>
    %c0_8 = arith.constant 0 : index
    %c0_9 = arith.constant 0 : index
    %17 = vector.load %arg3[%c0_8, %c0_9] : memref<1x128xf32, #tpu.memory_space<vmem>>, vector<1x128xf32>
    %18 = arith.mulf %16, %17 : vector<1x128xf32>
    %c0_10 = arith.constant 0 : index
    %c0_11 = arith.constant 0 : index
    %19 = vector.load %arg4[%c0_10, %c0_11] : memref<1x128xf32, #tpu.memory_space<vmem>>, vector<1x128xf32>
    %20 = arith.mulf %6, %18 : vector<1x128xf32>
    %21 = arith.subf %19, %20 : vector<1x128xf32>
    %22 = vector.broadcast %18 : vector<1x128xf32> to vector<128x128xf32>
    %23 = arith.mulf %2, %22 : vector<128x128xf32>
    %24 = vector.broadcast %21 : vector<1x128xf32> to vector<128x128xf32>
    %25 = arith.addf %23, %24 : vector<128x128xf32>
    %cst_12 = arith.constant 0.000000e+00 : f32
    %26 = vector.broadcast %cst_12 : f32 to vector<128x128xf32>
    %27 = arith.maximumf %25, %26 : vector<128x128xf32>
    %c0_13 = arith.constant 0 : index
    %c0_14 = arith.constant 0 : index
    %28 = vector.load %arg5[%c0_13, %c0_14] : memref<128x128xf32, #tpu.memory_space<vmem>>, vector<128x128xf32>
    tpu.vector_store %arg5[%c0_13, %c0_14], %27 {strides = array<i32>} : memref<128x128xf32, #tpu.memory_space<vmem>>, vector<128x128xf32>,
    return
  }
  func.func @transform_0(%arg0: i32) -> (i32, i32) {
    %c0_i32 = arith.constant 0 : i32
    %c0_i32_0 = arith.constant 0 : i32
    %c0_i32_1 = arith.constant 0 : i32
    return %c0_i32, %c0_i32_0 : i32, i32
  }
  func.func @transform_1(%arg0: i32) -> (i32, i32) {
    %c0_i32 = arith.constant 0 : i32
    %c0_i32_0 = arith.constant 0 : i32
    %c0_i32_1 = arith.constant 0 : i32
    return %c0_i32, %c0_i32_0 : i32, i32
  }
  func.func @transform_2(%arg0: i32) -> (i32, i32) {
    %c0_i32 = arith.constant 0 : i32
    %c0_i32_0 = arith.constant 0 : i32
    %c0_i32_1 = arith.constant 0 : i32
    return %c0_i32, %c0_i32_0 : i32, i32
  }
  func.func @transform_3(%arg0: i32) -> (i32, i32) {
    %c0_i32 = arith.constant 0 : i32
    %c0_i32_0 = arith.constant 0 : i32
    %c0_i32_1 = arith.constant 0 : i32
    return %c0_i32, %c0_i32_0 : i32, i32
  }
  func.func @transform_4(%arg0: i32) -> (i32, i32) {
    %c0_i32 = arith.constant 0 : i32
    %c0_i32_0 = arith.constant 0 : i32
    %c0_i32_1 = arith.constant 0 : i32
    return %c0_i32, %c0_i32_0 : i32, i32
  }
}

</mosaic_0001>

<llo_original>
// kernel: tpu_custom_call.1
$region0: #{tpu_custom_call.1}
  #allocation0 [shape = 'u32[]', space=smem, size = 0x4, offset = 0x4, fixed_abs, tag = 'smem constant byte address 0x4 - core index']
  #allocation1 [shape = 'u32[144,128]{1,0:T(1,128)}', space=vmem, size = 0x12000, scoped, tag = 'internal scratch']
  %s0 = inlined_call_operand.hbm [shape: bf16[128,128], index: 0, kind: input, shape index: {}]
  %s1 = inlined_call_operand.hbm [shape: bf16[128,128], index: 1, kind: input, shape index: {}]
  %s2 = inlined_call_operand.vmem [shape: f32[1,128], index: 2, kind: input, shape index: {}]
  %s3 = inlined_call_operand.vmem [shape: f32[1,128], index: 3, kind: input, shape index: {}]
  %s4 = inlined_call_operand.hbm [shape: f32[128,128], index: 4, kind: output, shape index: {}]
  %s5 = sld [smem:[#allocation0]]
  $region34: #{tpu_custom_call.1} parent=0
    _
  %s7 = ssub.s32 1, %s5
  %s8 = scalar_select 0, %s7, %s5
  $region1: #{tpu_custom_call.1} parent=0
    #allocation2 [shape = 'u8[32768]{0}', space=vmem, size = 0x8000, scoped, tag = 'input window, operand 0, single buffered']
    #allocation3 [shape = 's32[1]{0}', space=sflag, size = 0x4, scoped, tag = 'scoped memory for tpu_custom_call.1']
    #allocation4 [shape = 's32[1]{0}', space=sflag, size = 0x4, scoped, tag = 'scoped memory for tpu_custom_call.1']
    #allocation5 [shape = 'u8[32768]{0}', space=vmem, size = 0x8000, scoped, tag = 'input window, operand 1, single buffered']
    #allocation6 [shape = 's32[1]{0}', space=sflag, size = 0x4, scoped, tag = 'scoped memory for tpu_custom_call.1']
    #allocation7 [shape = 'u8[65536]{0}', space=vmem, size = 0x10000, scoped, tag = 'output window, operand 0, single buffered']
    %9 = vsyncpa [#allocation3], 0
    %10 = vsyncpa [#allocation6], 0
    %11 = vsyncpa [#allocation4], 0
    // Predicated region
    $region2: #{tpu_custom_call.1} parent=1 // pred_check
      _
    $region3: #{tpu_custom_call.1} parent=1 // pred_check_branch
      %13 = sbr.rel (0) target = $region5
    $region4: #{tpu_custom_call.1} parent=1 // pred_region
      %s15 = ssub.s32 1024, 1024
      %16 = vsyncadd [#allocation3], %s15
      %s17 = sshll.u32 [#allocation2], 4
      %s18 = int_to_ptr.vmem [resolvable:$true] %s17
      %23 = dma.hbm_to_vmem [thread:$0]  %s0, 1024, %s18, [#allocation3], 64, 64, 4
    $region5: #{tpu_custom_call.1} parent=1 // pred_fallthru
      _
    // Predicated region
    $region6: #{tpu_custom_call.1} parent=1 // pred_check
      _
    $region7: #{tpu_custom_call.1} parent=1 // pred_check_branch
      %25 = sbr.rel (0) target = $region9
    $region8: #{tpu_custom_call.1} parent=1 // pred_region
      %s27 = ssub.s32 1024, 1024
      %28 = vsyncadd [#allocation6], %s27
      %s29 = sshll.u32 [#allocation5], 4
      %s30 = int_to_ptr.vmem [resolvable:$true] %s29
      %35 = dma.hbm_to_vmem [thread:$0]  %s1, 1024, %s30, [#allocation6], 64, 64, 4
    $region9: #{tpu_custom_call.1} parent=1 // pred_fallthru
      _
    // Predicated region
    $region10: #{tpu_custom_call.1} parent=1 // pred_check
      _
    $region11: #{tpu_custom_call.1} parent=1 // pred_check_branch
      %37 = sbr.rel (0) target = $region13
    $region12: #{tpu_custom_call.1} parent=1 // pred_region
      _
    $region13: #{tpu_custom_call.1} parent=1 // pred_fallthru
      _
    // Predicated region
    $region14: #{tpu_custom_call.1} parent=1 // pred_check
      _
    $region15: #{tpu_custom_call.1} parent=1 // pred_check_branch
      %39 = sbr.rel (0) target = $region17
    $region16: #{tpu_custom_call.1} parent=1 // pred_region
      _
    $region17: #{tpu_custom_call.1} parent=1 // pred_fallthru
      _
    // Predicated region
    $region18: #{tpu_custom_call.1} parent=1 // pred_check
      _
    $region19: #{tpu_custom_call.1} parent=1 // pred_check_branch
      %41 = sbr.rel (0) target = $region21
    $region20: #{tpu_custom_call.1} parent=1 // pred_region
      %42 = dma.done [#allocation3], 1024
    $region21: #{tpu_custom_call.1} parent=1 // pred_fallthru
      _
    // Predicated region
    $region22: #{tpu_custom_call.1} parent=1 // pred_check
      _
    $region23: #{tpu_custom_call.1} parent=1 // pred_check_branch
      %44 = sbr.rel (0) target = $region25
    $region24: #{tpu_custom_call.1} parent=1 // pred_region
      %45 = dma.done [#allocation6], 1024
    $region25: #{tpu_custom_call.1} parent=1 // pred_fallthru
      _
    %v47 = vld [vmem:[#allocation2] sm:$0xf]
    %v48 = vld [vmem:[#allocation2 + $0x4] sm:$0xf]
    %v49 = vld [vmem:[#allocation2 + $0x8] sm:$0xf]
    %v50 = vld [vmem:[#allocation2 + $0xc] sm:$0xf]
    %v51 = vld [vmem:[#allocation2 + $0x10] sm:$0xf]
    %v52 = vld [vmem:[#allocation2 + $0x14] sm:$0xf]
    %v53 = vld [vmem:[#allocation2 + $0x18] sm:$0xf]
    %v54 = vld [vmem:[#allocation2 + $0x1c] sm:$0xf]
    %v55 = vld [vmem:[#allocation2 + $0x20] sm:$0xf]
    %v56 = vld [vmem:[#allocation2 + $0x24] sm:$0xf]
    %v57 = vld [vmem:[#allocation2 + $0x28] sm:$0xf]
    %v58 = vld [vmem:[#allocation2 + $0x2c] sm:$0xf]
    %v59 = vld [vmem:[#allocation2 + $0x30] sm:$0xf]
    %v60 = vld [vmem:[#allocation2 + $0x34] sm:$0xf]
    %v61 = vld [vmem:[#allocation2 + $0x38] sm:$0xf]
    %v62 = vld [vmem:[#allocation2 + $0x3c] sm:$0xf]
    %v63 = vld [vmem:[#allocation5] sm:$0xf]
    %v64 = vld [vmem:[#allocation5 + $0x4] sm:$0xf]
    %v65 = vld [vmem:[#allocation5 + $0x8] sm:$0xf]
    %v66 = vld [vmem:[#allocation5 + $0xc] sm:$0xf]
    %v67 = vld [vmem:[#allocation5 + $0x10] sm:$0xf]
    %v68 = vld [vmem:[#allocation5 + $0x14] sm:$0xf]
    %v69 = vld [vmem:[#allocation5 + $0x18] sm:$0xf]
    %v70 = vld [vmem:[#allocation5 + $0x1c] sm:$0xf]
    %v71 = vld [vmem:[#allocation5 + $0x20] sm:$0xf]
    %v72 = vld [vmem:[#allocation5 + $0x24] sm:$0xf]
    %v73 = vld [vmem:[#allocation5 + $0x28] sm:$0xf]
    %v74 = vld [vmem:[#allocation5 + $0x2c] sm:$0xf]
    %v75 = vld [vmem:[#allocation5 + $0x30] sm:$0xf]
    %v76 = vld [vmem:[#allocation5 + $0x34] sm:$0xf]
    %v77 = vld [vmem:[#allocation5 + $0x38] sm:$0xf]
    %v78 = vld [vmem:[#allocation5 + $0x3c] sm:$0xf]
    %v95 = vunpack.c.l.b16 %v47
    %v96 = vunpack.c.l.b16 %v48
    %v97 = vunpack.c.l.b16 %v49
    %v98 = vunpack.c.l.b16 %v50
    %v99 = vunpack.c.l.b16 %v51
    %v100 = vunpack.c.l.b16 %v52
    %v101 = vunpack.c.l.b16 %v53
    %v102 = vunpack.c.l.b16 %v54
    %v103 = vunpack.c.l.b16 %v55
    %v104 = vunpack.c.l.b16 %v56
    %v105 = vunpack.c.l.b16 %v57
    %v106 = vunpack.c.l.b16 %v58
    %v107 = vunpack.c.l.b16 %v59
    %v108 = vunpack.c.l.b16 %v60
    %v109 = vunpack.c.l.b16 %v61
    %v110 = vunpack.c.l.b16 %v62
    %v111 = vpack.c.b16 %v96, %v95
    %v112 = vpack.c.b16 %v98, %v97
    %v113 = vpack.c.b16 %v100, %v99
    %v114 = vpack.c.b16 %v102, %v101
    %v115 = vpack.c.b16 %v104, %v103
    %v116 = vpack.c.b16 %v106, %v105
    %v117 = vpack.c.b16 %v108, %v107
    %v118 = vpack.c.b16 %v110, %v109
    %v143 = vunpack.c.l.b16 %v63
    %v144 = vunpack.c.l.b16 %v64
    %v145 = vunpack.c.l.b16 %v65
    %v146 = vunpack.c.l.b16 %v66
    %v147 = vunpack.c.l.b16 %v67
    %v148 = vunpack.c.l.b16 %v68
    %v149 = vunpack.c.l.b16 %v69
    %v150 = vunpack.c.l.b16 %v70
    %v151 = vunpack.c.l.b16 %v71
    %v152 = vunpack.c.l.b16 %v72
    %v153 = vunpack.c.l.b16 %v73
    %v154 = vunpack.c.l.b16 %v74
    %v155 = vunpack.c.l.b16 %v75
    %v156 = vunpack.c.l.b16 %v76
    %v157 = vunpack.c.l.b16 %v77
    %v158 = vunpack.c.l.b16 %v78
    %v159 = vpack.c.b16 %v144, %v143
    %v160 = vpack.c.b16 %v146, %v145
    %v161 = vpack.c.b16 %v148, %v147
    %v162 = vpack.c.b16 %v150, %v149
    %v163 = vpack.c.b16 %v152, %v151
    %v164 = vpack.c.b16 %v154, %v153
    %v165 = vpack.c.b16 %v156, %v155
    %v166 = vpack.c.b16 %v158, %v157
    %175 = vmatprep.subr.bf16.mxu0 0
    %176 = vmatpush1.bf16.msra.mxu0 %v166
    %177 = vmatprep.subr.bf16.mxu0 0
    %178 = vmatpush1.bf16.msra.mxu0 %v165
    %179 = vmatprep.subr.bf16.mxu0 0
    %180 = vmatpush1.bf16.msra.mxu0 %v164
    %181 = vmatprep.subr.bf16.mxu0 0
    %182 = vmatpush1.bf16.msra.mxu0 %v163
    %183 = vmatprep.subr.bf16.mxu0 0
    %184 = vmatpush1.bf16.msra.mxu0 %v162
    %185 = vmatprep.subr.bf16.mxu0 0
    %186 = vmatpush1.bf16.msra.mxu0 %v161
    %187 = vmatprep.subr.bf16.mxu0 0
    %188 = vmatpush1.bf16.msra.mxu0 %v160
    %189 = vmatprep.subr.bf16.mxu0 0
    %190 = vmatpush1.bf16.msra.mxu0 %v159
    %191 = vmatprep.subr.bf16.mxu0 0
    %192 = vmatpush2.bf16.msra.mxu0 0
    %193 = vmatprep.subr.bf16.mxu0 0
    %194 = vmatpush2.bf16.msra.mxu0 0
    %195 = vmatprep.subr.bf16.mxu0 0
    %196 = vmatpush2.bf16.msra.mxu0 0
    %197 = vmatprep.subr.bf16.mxu0 0
    %198 = vmatpush2.bf16.msra.mxu0 0
    %199 = vmatprep.subr.bf16.mxu0 0
    %200 = vmatpush2.bf16.msra.mxu0 0
    %201 = vmatprep.subr.bf16.mxu0 0
    %202 = vmatpush2.bf16.msra.mxu0 0
    %203 = vmatprep.subr.bf16.mxu0 0
    %204 = vmatpush2.bf16.msra.mxu0 0
    %205 = vmatprep.subr.bf16.mxu0 0
    %206 = vmatpush2.bf16.msra.mxu0 0
    %207 = vmatprep.mubr.bf16.mxu0 0
    %208 = vmatmul.mubr.bf16.gmra.mxu0 %v111
    %v209 = vpop.f32.mrf.mxu0
    %v210 = vadd.f32 0.0, %v209
    %v211 = vpop.f32.mrf.mxu0
    %v212 = vpop.f32.mrf.mxu0
    %v213 = vadd.f32 0.0, %v212
    %v214 = vpop.f32.mrf.mxu0
    %215 = vmatprep.mubr.bf16.mxu0 0
    %216 = vmatmul.mubr.bf16.gmra.mxu0 %v112
    %v217 = vpop.f32.mrf.mxu0
    %v218 = vadd.f32 0.0, %v217
    %v219 = vpop.f32.mrf.mxu0
    %v220 = vpop.f32.mrf.mxu0
    %v221 = vadd.f32 0.0, %v220
    %v222 = vpop.f32.mrf.mxu0
    %223 = vmatprep.mubr.bf16.mxu0 0
    %224 = vmatmul.mubr.bf16.gmra.mxu0 %v113
    %v225 = vpop.f32.mrf.mxu0
    %v226 = vadd.f32 0.0, %v225
    %v227 = vpop.f32.mrf.mxu0
    %v228 = vpop.f32.mrf.mxu0
    %v229 = vadd.f32 0.0, %v228
    %v230 = vpop.f32.mrf.mxu0
    %231 = vmatprep.mubr.bf16.mxu0 0
    %232 = vmatmul.mubr.bf16.gmra.mxu0 %v114
    %v233 = vpop.f32.mrf.mxu0
    %v234 = vadd.f32 0.0, %v233
    %v235 = vpop.f32.mrf.mxu0
    %v236 = vpop.f32.mrf.mxu0
    %v237 = vadd.f32 0.0, %v236
    %v238 = vpop.f32.mrf.mxu0
    %239 = vmatprep.mubr.bf16.mxu0 0
    %240 = vmatmul.mubr.bf16.gmra.mxu0 %v115
    %v241 = vpop.f32.mrf.mxu0
    %v242 = vadd.f32 0.0, %v241
    %v243 = vpop.f32.mrf.mxu0
    %v244 = vpop.f32.mrf.mxu0
    %v245 = vadd.f32 0.0, %v244
    %v246 = vpop.f32.mrf.mxu0
    %247 = vmatprep.mubr.bf16.mxu0 0
    %248 = vmatmul.mubr.bf16.gmra.mxu0 %v116
    %v249 = vpop.f32.mrf.mxu0
    %v250 = vadd.f32 0.0, %v249
    %v251 = vpop.f32.mrf.mxu0
    %v252 = vpop.f32.mrf.mxu0
    %v253 = vadd.f32 0.0, %v252
    %v254 = vpop.f32.mrf.mxu0
    %255 = vmatprep.mubr.bf16.mxu0 0
    %256 = vmatmul.mubr.bf16.gmra.mxu0 %v117
    %v257 = vpop.f32.mrf.mxu0
    %v258 = vadd.f32 0.0, %v257
    %v259 = vpop.f32.mrf.mxu0
    %v260 = vpop.f32.mrf.mxu0
    %v261 = vadd.f32 0.0, %v260
    %v262 = vpop.f32.mrf.mxu0
    %263 = vmatprep.mubr.bf16.mxu0 0
    %264 = vmatmul.mubr.bf16.gmra.mxu0 %v118
    %v265 = vpop.f32.mrf.mxu0
    %v266 = vadd.f32 0.0, %v265
    %v267 = vpop.f32.mrf.mxu0
    %v268 = vpop.f32.mrf.mxu0
    %v269 = vadd.f32 0.0, %v268
    %v270 = vpop.f32.mrf.mxu0
    %271 = vdwg.mxu0
    %v272 = vadd.f32 %v210, %v213
    %v273 = vadd.f32 %v272, %v218
    %v274 = vadd.f32 %v273, %v221
    %v275 = vadd.f32 %v274, %v226
    %v276 = vadd.f32 %v275, %v229
    %v277 = vadd.f32 %v276, %v234
    %v278 = vadd.f32 %v277, %v237
    %v279 = vadd.f32 %v278, %v242
    %v280 = vadd.f32 %v279, %v245
    %v281 = vadd.f32 %v280, %v250
    %v282 = vadd.f32 %v281, %v253
    %v283 = vadd.f32 %v282, %v258
    %v284 = vadd.f32 %v283, %v261
    %v285 = vadd.f32 %v284, %v266
    %v286 = vadd.f32 %v285, %v269
    %v287 = vrot.slane %v286, 4
    %v288 = vadd.f32 %v286, %v287
    %v289 = vrot.slane %v288, 2
    %v290 = vadd.f32 %v288, %v289
    %v291 = vrot.slane %v290, 1
    %v292 = vadd.f32 %v290, %v291
    %v293 = vmul.f32 %v292, 0.0078125
    %v294 = vmul.f32 %v210, %v210
    %v295 = vmul.f32 %v213, %v213
    %v296 = vmul.f32 %v218, %v218
    %v297 = vmul.f32 %v221, %v221
    %v298 = vmul.f32 %v226, %v226
    %v299 = vmul.f32 %v229, %v229
    %v300 = vmul.f32 %v234, %v234
    %v301 = vmul.f32 %v237, %v237
    %v302 = vmul.f32 %v242, %v242
    %v303 = vmul.f32 %v245, %v245
    %v304 = vmul.f32 %v250, %v250
    %v305 = vmul.f32 %v253, %v253
    %v306 = vmul.f32 %v258, %v258
    %v307 = vmul.f32 %v261, %v261
    %v308 = vmul.f32 %v266, %v266
    %v309 = vmul.f32 %v269, %v269
    %v310 = vadd.f32 %v294, %v295
    %v311 = vadd.f32 %v310, %v296
    %v312 = vadd.f32 %v311, %v297
    %v313 = vadd.f32 %v312, %v298
    %v314 = vadd.f32 %v313, %v299
    %v315 = vadd.f32 %v314, %v300
    %v316 = vadd.f32 %v315, %v301
    %v317 = vadd.f32 %v316, %v302
    %v318 = vadd.f32 %v317, %v303
    %v319 = vadd.f32 %v318, %v304
    %v320 = vadd.f32 %v319, %v305
    %v321 = vadd.f32 %v320, %v306
    %v322 = vadd.f32 %v321, %v307
    %v323 = vadd.f32 %v322, %v308
    %v324 = vadd.f32 %v323, %v309
    %v325 = vrot.slane %v324, 4
    %v326 = vadd.f32 %v324, %v325
    %v327 = vrot.slane %v326, 2
    %v328 = vadd.f32 %v326, %v327
    %v329 = vrot.slane %v328, 1
    %v330 = vadd.f32 %v328, %v329
    %v331 = vmul.f32 %v330, 0.0078125
    %v332 = vmul.f32 %v293, %v293
    %v333 = vsub.f32 %v331, %v332
    %v334 = vadd.f32 %v333, 1e-05
    %v335 = vrsqrt.pop %v334
    %v336 = vld [vmem:[%s2] sm:$0x1]
    %v337 = vmul.f32 %v335, %v336
    %v338 = vld [vmem:[%s3] sm:$0x1]
    %v339 = vmul.f32 %v293, %v337
    %v340 = vsub.f32 %v338, %v339
    %v341 = vlaneseq
    %v342 = vshrl.u32 %v341, 7
    %v343 = vsub.s32 0, %v342
    %v344 = vrot.slane %v337, %v343
    %v345 = vmul.f32 %v210, %v344
    %v346 = vmul.f32 %v213, %v344
    %v347 = vmul.f32 %v218, %v344
    %v348 = vmul.f32 %v221, %v344
    %v349 = vmul.f32 %v226, %v344
    %v350 = vmul.f32 %v229, %v344
    %v351 = vmul.f32 %v234, %v344
    %v352 = vmul.f32 %v237, %v344
    %v353 = vmul.f32 %v242, %v344
    %v354 = vmul.f32 %v245, %v344
    %v355 = vmul.f32 %v250, %v344
    %v356 = vmul.f32 %v253, %v344
    %v357 = vmul.f32 %v258, %v344
    %v358 = vmul.f32 %v261, %v344
    %v359 = vmul.f32 %v266, %v344
    %v360 = vmul.f32 %v269, %v344
    %v362 = vlaneseq
    %v363 = vshrl.u32 %v362, 7
    %v364 = vsub.s32 0, %v363
    %v365 = vrot.slane %v340, %v364
    %v367 = vadd.f32 %v345, %v365
    %v368 = vadd.f32 %v346, %v365
    %v369 = vadd.f32 %v347, %v365
    %v370 = vadd.f32 %v348, %v365
    %v371 = vadd.f32 %v349, %v365
    %v372 = vadd.f32 %v350, %v365
    %v373 = vadd.f32 %v351, %v365
    %v374 = vadd.f32 %v352, %v365
    %v375 = vadd.f32 %v353, %v365
    %v376 = vadd.f32 %v354, %v365
    %v377 = vadd.f32 %v355, %v365
    %v378 = vadd.f32 %v356, %v365
    %v379 = vadd.f32 %v357, %v365
    %v380 = vadd.f32 %v358, %v365
    %v381 = vadd.f32 %v359, %v365
    %v382 = vadd.f32 %v360, %v365
    %v383 = vmax.f32 %v367, 0.0
    %v384 = vmax.f32 %v368, 0.0
    %v385 = vmax.f32 %v369, 0.0
    %v386 = vmax.f32 %v370, 0.0
    %v387 = vmax.f32 %v371, 0.0
    %v388 = vmax.f32 %v372, 0.0
    %v389 = vmax.f32 %v373, 0.0
    %v390 = vmax.f32 %v374, 0.0
    %v391 = vmax.f32 %v375, 0.0
    %v392 = vmax.f32 %v376, 0.0
    %v393 = vmax.f32 %v377, 0.0
    %v394 = vmax.f32 %v378, 0.0
    %v395 = vmax.f32 %v379, 0.0
    %v396 = vmax.f32 %v380, 0.0
    %v397 = vmax.f32 %v381, 0.0
    %v398 = vmax.f32 %v382, 0.0
    %399 = vst [vmem:[#allocation7] sm:$0xff] %v383
    %400 = vst [vmem:[#allocation7 + $0x8] sm:$0xff] %v384
    %401 = vst [vmem:[#allocation7 + $0x10] sm:$0xff] %v385
    %402 = vst [vmem:[#allocation7 + $0x18] sm:$0xff] %v386
    %403 = vst [vmem:[#allocation7 + $0x20] sm:$0xff] %v387
    %404 = vst [vmem:[#allocation7 + $0x28] sm:$0xff] %v388
    %405 = vst [vmem:[#allocation7 + $0x30] sm:$0xff] %v389
    %406 = vst [vmem:[#allocation7 + $0x38] sm:$0xff] %v390
    %407 = vst [vmem:[#allocation7 + $0x40] sm:$0xff] %v391
    %408 = vst [vmem:[#allocation7 + $0x48] sm:$0xff] %v392
    %409 = vst [vmem:[#allocation7 + $0x50] sm:$0xff] %v393
    %410 = vst [vmem:[#allocation7 + $0x58] sm:$0xff] %v394
    %411 = vst [vmem:[#allocation7 + $0x60] sm:$0xff] %v395
    %412 = vst [vmem:[#allocation7 + $0x68] sm:$0xff] %v396
    %413 = vst [vmem:[#allocation7 + $0x70] sm:$0xff] %v397
    %414 = vst [vmem:[#allocation7 + $0x78] sm:$0xff] %v398
    // Predicated region
    $region26: #{tpu_custom_call.1} parent=1 // pred_check
      _
    $region27: #{tpu_custom_call.1} parent=1 // pred_check_branch
      %416 = sbr.rel (0) target = $region29
    $region28: #{tpu_custom_call.1} parent=1 // pred_region
      %s418 = ssub.s32 2048, 2048
      %419 = vsyncadd [#allocation4], %s418
      %s420 = sshll.u32 [#allocation7], 4
      %s421 = int_to_ptr.vmem [resolvable:$true] %s420
      %426 = dma.vmem_to_hbm [thread:$0]  %s421, 2048, %s4, [#allocation4], 128, 128, 8
    $region29: #{tpu_custom_call.1} parent=1 // pred_fallthru
      _
    // Predicated region
    $region30: #{tpu_custom_call.1} parent=1 // pred_check
      _
    $region31: #{tpu_custom_call.1} parent=1 // pred_check_branch
      %428 = sbr.rel (0) target = $region33
    $region32: #{tpu_custom_call.1} parent=1 // pred_region
      %429 = dma.done [#allocation4], 2048
    $region33: #{tpu_custom_call.1} parent=1 // pred_fallthru
      _
    %430 = vsyncpa [#allocation3], 1
    %431 = vsyncpa [#allocation6], 1
    %432 = vsyncpa [#allocation4], 1

</llo_original>
